<compile_context>
chip_gen: v7x
topology: tpu7x:2x2x1
jax: 0.10.0
libtpu: 0.0.40
codegen_flags: <defaults>
</compile_context>

<pallas_src>
import jax
import jax.numpy as jnp
from jax.experimental import pallas as pl
from jax.experimental.pallas import tpu as pltpu

_TB_MAX = 1024  # absolute cap on rows per block


def _round_up(x, m):
    return ((x + m - 1) // m) * m


def _cdiv(a, b):
    return -(-a // b)


# --------------------------------------------------------------------------- #
# Kernel
# --------------------------------------------------------------------------- #
def _sampler_kernel(scores_ref, u_ref, group_ref, adj_ref, ll_ref):
    """One batch tile of the straight-through Bernoulli edge sampler.

    scores_ref : (TB, N*N) f32   per-edge logits, lane-dense layout
    u_ref      : (TB, N*N) f32   uniform(0,1) noise (host-generated)
    group_ref  : (N*N, N)  f32   constant 0/1 "sum N consecutive edges" matrix
    adj_ref    : (TB, N*N) bf16  hard 0/1 adjacency sample
    ll_ref     : (TB, N)   f32   per-node Bernoulli log-likelihood of the sample
    """
    s = scores_ref[...]
    u = u_ref[...]

    # Single transcendental shared by sampler and softplus:
    #   e = exp(-|s|);  sigmoid(s) = 1/(1+e) if s >= 0 else e/(1+e)
    e = jnp.exp(-jnp.abs(s))

    # Straight-through hard forward value:
    #   sigmoid((s + logit(u))/tau) > 0.5  (tau > 0)  <=>  Bernoulli(sigmoid(s))
    #   <=>  u < sigmoid(s)  <=>  u*(1+e) < (1 if s>=0 else e)   (no logs/divides)
    hard = (u * (1.0 + e) < jnp.where(s >= 0.0, 1.0, e)).astype(jnp.float32)
    adj_ref[...] = hard.astype(adj_ref.dtype)

    # Per-edge log-likelihood under p = sigmoid(s):
    #   hard*log p + (1-hard)*log(1-p) == hard*s - softplus(s)
    softplus = jnp.maximum(s, 0.0) + jnp.log1p(e)
    ll_edge = hard * s - softplus

    # Per-node reduction: group-sum of N consecutive lanes on the MXU (f32).
    ll_ref[...] = jnp.dot(ll_edge, group_ref[...],
                          preferred_element_type=jnp.float32)


# --------------------------------------------------------------------------- #
# Tiling / device heuristics
# --------------------------------------------------------------------------- #
def _device_profile():
    try:
        kind = jax.devices()[0].device_kind.lower()
    except Exception:
        kind = ""
    multi_core = ("v7" in kind) or ("7x" in kind)   # v7x: 2 TensorCores / chip
    try:
        info = pltpu.get_tpu_info()
        vmem_phys = int(getattr(info, "vmem_capacity_bytes", 64 * 1024 * 1024))
    except Exception:
        vmem_phys = 64 * 1024 * 1024                # conservative (v7x-sized)
    return multi_core, vmem_phys


def _choose_tiling(B, N, adj_bytes, max_rows_per_block):
    NN = N * N
    multi_core, vmem_phys = _device_profile()

    # sublane alignment follows the narrowest array written (adj)
    sub = {4: 8, 2: 16, 1: 32}[adj_bytes]

    # VMEM limit: stay well under the physical capacity of the generation
    # (v5e/v6e 128 MiB, v7x 64 MiB); use half of it for resident blocks.
    vmem_limit = min((vmem_phys * 3) // 4, 64 * 1024 * 1024)
    budget = vmem_limit // 2
    # constant group matrix (double-buffered) comes off the top
    budget -= 2 * NN * N * 4
    # per-row resident bytes: 2x double-buffered f32 inputs (scores, u),
    # 2x double-buffered adj output, ~4 live (TB, NN) f32 temporaries, ll rows.
    per_row = NN * (2 * (4 + 4) + 2 * adj_bytes + 4 * 4) + 2 * 4 * N
    tb_fit = max(sub, (budget // per_row) // sub * sub)

    TB = min(max_rows_per_block, _TB_MAX, tb_fit, _round_up(B, sub))
    if multi_core:
        # give each of the two TensorCores >= 2 pipelined steps when B allows
        tb_target = max(sub, _round_up(_cdiv(B, 4), sub))
        TB = min(TB, tb_target)
    TB = max(sub, (TB // sub) * sub)
    B_pad = _round_up(B, TB)
    return TB, B_pad, vmem_limit


# --------------------------------------------------------------------------- #
# Host wrappers
# --------------------------------------------------------------------------- #
def _sample_pallas(scores, noise_key, adj_dtype=jnp.bfloat16,
                   max_rows_per_block=_TB_MAX):
    B, N, N2 = scores.shape
    assert N == N2, "scores must be (B, N, N)"
    NN = N * N
    adj_bytes = jnp.dtype(adj_dtype).itemsize
    TB, B_pad, vmem_limit = _choose_tiling(B, N, adj_bytes, max_rows_per_block)

    scores2d = scores.reshape(B, NN).astype(jnp.float32)
    if B_pad != B:
        scores2d = jnp.pad(scores2d, ((0, B_pad - B), (0, 0)))

    # Uniform noise in (0,1), generated host-side (portable: no TPU PRNG
    # primitives inside the kernel body).
    u2d = jax.random.uniform(noise_key, (B_pad, NN), dtype=jnp.float32,
                             minval=2.0 ** -24, maxval=1.0)

    # Constant 0/1 matrix summing each group of N consecutive edges -> node.
    group = (jnp.arange(NN, dtype=jnp.int32)[:, None] // N
             == jnp.arange(N, dtype=jnp.int32)[None, :]).astype(jnp.float32)

    adj2d, ll = pl.pallas_call(
        _sampler_kernel,
        out_shape=(
            jax.ShapeDtypeStruct((B_pad, NN), adj_dtype),   # 0/1 exact in bf16
            jax.ShapeDtypeStruct((B_pad, N), jnp.float32),
        ),
        grid_spec=pltpu.PrefetchScalarGridSpec(
            num_scalar_prefetch=0,
            grid=(B_pad // TB,),
            in_specs=[
                pl.BlockSpec((TB, NN), lambda b: (b, 0)),   # scores (lane-dense)
                pl.BlockSpec((TB, NN), lambda b: (b, 0)),   # uniform noise
                pl.BlockSpec((NN, N), lambda b: (0, 0)),    # constant group matrix
            ],
            out_specs=(
                pl.BlockSpec((TB, NN), lambda b: (b, 0)),   # adj (lane-dense)
                pl.BlockSpec((TB, N), lambda b: (b, 0)),    # ll
            ),
        ),
        compiler_params=pltpu.CompilerParams(
            dimension_semantics=("parallel",),
            vmem_limit_bytes=int(vmem_limit)),
    )(scores2d, u2d, group)

    adj = adj2d[:B].reshape(B, N, N)
    return adj, ll[:B]


def _to_connectivity(adj, dummy_nodes):
    # glue: dense adjacency -> fully-connected edge_index / edge_weight
    # (non-'sf' sampling mode => adjs_to_fc_edge_index semantics)
    if dummy_nodes > 0:
        adj = adj[..., :-dummy_nodes, :-dummy_nodes]
    B, N, _ = adj.shape
    row = jnp.repeat(jnp.arange(N, dtype=jnp.int32), N)
    col = jnp.tile(jnp.arange(N, dtype=jnp.int32), N)
    base = jnp.stack([row, col], axis=0)                       # (2, N*N)
    offsets = (jnp.arange(B, dtype=jnp.int32) * N)[:, None, None]
    edge_index = (base[None] + offsets).transpose(1, 0, 2).reshape(2, B * N * N)
    edge_weight = adj.reshape(B * N * N)
    return adj, (edge_index, edge_weight)


def graph_sampler_forward(scores, seed=0, tau=1.0, dummy_nodes=0,
                          adj_dtype=jnp.bfloat16, max_rows_per_block=_TB_MAX):
    """Forward pass of GraphSampler(mode='st', sampler_type='bes').

    tau only rescales the soft relaxation; the straight-through *forward value*
    is the hard threshold, which for tau > 0 equals a Bernoulli(sigmoid(scores))
    draw, so tau never enters the kernel.
    """
    assert tau > 0.0
    noise_key = jax.random.PRNGKey(seed)
    adj, ll = _sample_pallas(scores, noise_key, adj_dtype=adj_dtype,
                             max_rows_per_block=max_rows_per_block)
    adj, edge_index = _to_connectivity(adj, dummy_nodes)
    if dummy_nodes > 0 and ll is not None:
        assert ll.shape[-1] == adj.shape[-1] + dummy_nodes
        ll = ll[..., :-dummy_nodes]
    return adj, edge_index, ll
    # TODO(synk): straight-through gradient (backward) not implemented; forward only.


def _check(scores, adj, edge_index, edge_weight, ll):
    B, N, _ = scores.shape
    assert adj.shape == (B, N, N)
    assert ll.shape == (B, N)
    assert edge_index.shape == (2, B * N * N)
    assert edge_weight.shape == (B * N * N,)
    adj_f = adj.astype(jnp.float32)
    assert bool(jnp.all((adj_f == 0.0) | (adj_f == 1.0)))
    # ll consistency: recompute Bernoulli log-lik of the sampled adjacency in plain JAX
    ll_ref = jnp.sum(adj_f * jax.nn.log_sigmoid(scores)
                     + (1.0 - adj_f) * jax.nn.log_sigmoid(-scores), axis=-1)
    assert bool(jnp.allclose(ll, ll_ref, atol=1e-4, rtol=1e-4))
    assert bool(jnp.all(ll <= 0.0))


if __name__ == "__main__":
    key = jax.random.PRNGKey(0)
    k1, k2 = jax.random.split(key)

    # small case (matches the module's typical graph size)
    B, N = 2, 16
    scores = jax.random.normal(k1, (B, N, N), dtype=jnp.float32)
    adj, (edge_index, edge_weight), ll = graph_sampler_forward(
        scores, seed=0, tau=1.0, dummy_nodes=0)
    jax.block_until_ready((adj, edge_index, edge_weight, ll))
    _check(scores, adj, edge_index, edge_weight, ll)

    # larger batch with a small block cap: exercises the padded, multi-step grid
    B2 = 300
    scores2 = jax.random.normal(k2, (B2, N, N), dtype=jnp.float32)
    adj2, (ei2, ew2), ll2 = graph_sampler_forward(
        scores2, seed=7, tau=0.5, dummy_nodes=0, max_rows_per_block=128)
    jax.block_until_ready((adj2, ei2, ew2, ll2))
    _check(scores2, adj2, ei2, ew2, ll2)

    print("KERNEL_OK")
</pallas_src>

<mosaic_0001>
module attributes {stable_mosaic.version = 11 : i64} {
  func.func @_sampler_kernel(%arg0: i32, %arg1: memref<16x256xf32, #tpu.memory_space<vmem>>, %arg2: memref<16x256xf32, #tpu.memory_space<vmem>>, %arg3: memref<256x16xf32, #tpu.memory_space<vmem>>, %arg4: memref<16x256xbf16, #tpu.memory_space<vmem>>, %arg5: memref<16x16xf32, #tpu.memory_space<vmem>>) attributes {dimension_semantics = [#tpu.dimension_semantics<parallel>], iteration_bounds = array<i64: 1>, scalar_prefetch = 0 : i64, scratch_operands = 0 : i64, tpu.core_type = #tpu.core_type<tc>, window_params = [{transform_indices = @transform_0, window_bounds = array<i64: 16, 256>}, {transform_indices = @transform_1, window_bounds = array<i64: 16, 256>}, {pipeline_mode = #tpu.pipeline_mode<synchronous>, transform_indices = @transform_2, window_bounds = array<i64: 256, 16>}, {transform_indices = @transform_3, window_bounds = array<i64: 16, 256>}, {transform_indices = @transform_4, window_bounds = array<i64: 16, 16>}]} {
    %c0 = arith.constant 0 : index
    %c0_0 = arith.constant 0 : index
    %0 = vector.load %arg1[%c0, %c0_0] : memref<16x256xf32, #tpu.memory_space<vmem>>, vector<16x256xf32>
    %c0_1 = arith.constant 0 : index
    %c0_2 = arith.constant 0 : index
    %1 = vector.load %arg2[%c0_1, %c0_2] : memref<16x256xf32, #tpu.memory_space<vmem>>, vector<16x256xf32>
    %2 = math.absf %0 : vector<16x256xf32>
    %cst = arith.constant 0.000000e+00 : f32
    %3 = vector.broadcast %cst : f32 to vector<16x256xf32>
    %4 = arith.subf %3, %2 : vector<16x256xf32>
    %5 = math.exp %4 : vector<16x256xf32>
    %cst_3 = arith.constant 1.000000e+00 : f32
    %6 = vector.broadcast %cst_3 : f32 to vector<16x256xf32>
    %7 = arith.addf %6, %5 : vector<16x256xf32>
    %8 = arith.mulf %1, %7 : vector<16x256xf32>
    %cst_4 = arith.constant 0.000000e+00 : f32
    %9 = vector.broadcast %cst_4 : f32 to vector<16x256xf32>
    %10 = arith.cmpf oge, %0, %9 : vector<16x256xf32>
    %cst_5 = arith.constant 1.000000e+00 : f32
    %11 = vector.broadcast %cst_5 : f32 to vector<16x256xf32>
    %12 = arith.select %10, %11, %5 : vector<16x256xi1>, vector<16x256xf32>
    %13 = arith.cmpf olt, %8, %12 : vector<16x256xf32>
    %14 = arith.extui %13 : vector<16x256xi1> to vector<16x256xi32>
    %15 = arith.sitofp %14 : vector<16x256xi32> to vector<16x256xf32>
    %16 = arith.truncf %15 : vector<16x256xf32> to vector<16x256xbf16>
    %c0_6 = arith.constant 0 : index
    %c0_7 = arith.constant 0 : index
    %17 = vector.load %arg4[%c0_6, %c0_7] : memref<16x256xbf16, #tpu.memory_space<vmem>>, vector<16x256xbf16>
    tpu.vector_store %arg4[%c0_6, %c0_7], %16 {strides = array<i32>} : memref<16x256xbf16, #tpu.memory_space<vmem>>, vector<16x256xbf16>,
    %cst_8 = arith.constant 0.000000e+00 : f32
    %18 = vector.broadcast %cst_8 : f32 to vector<16x256xf32>
    %19 = arith.maximumf %0, %18 : vector<16x256xf32>
    %20 = math.log1p %5 : vector<16x256xf32>
    %21 = arith.addf %19, %20 : vector<16x256xf32>
    %22 = arith.mulf %15, %0 : vector<16x256xf32>
    %23 = arith.subf %22, %21 : vector<16x256xf32>
    %c0_9 = arith.constant 0 : index
    %c0_10 = arith.constant 0 : index
    %24 = vector.load %arg3[%c0_9, %c0_10] : memref<256x16xf32, #tpu.memory_space<vmem>>, vector<256x16xf32>
    %cst_11 = arith.constant dense<0.000000e+00> : vector<16x16xf32>
    %25 = tpu.matmul %23, %24, %cst_11 {dimension_numbers = #tpu.dot_dimension_numbers<[1], [0], [0], [1], [0, 0, 1, 1], [], []>} : vector<16x256xf32>, vector<256x16xf32>, vector<16x16xf32> -> vector<16x16xf32>
    %c0_12 = arith.constant 0 : index
    %c0_13 = arith.constant 0 : index
    %26 = vector.load %arg5[%c0_12, %c0_13] : memref<16x16xf32, #tpu.memory_space<vmem>>, vector<16x16xf32>
    tpu.vector_store %arg5[%c0_12, %c0_13], %25 {strides = array<i32>} : memref<16x16xf32, #tpu.memory_space<vmem>>, vector<16x16xf32>,
    return
  }
  func.func @transform_0(%arg0: i32) -> (i32, i32) {
    %c0_i32 = arith.constant 0 : i32
    %c0_i32_0 = arith.constant 0 : i32
    return %arg0, %c0_i32 : i32, i32
  }
  func.func @transform_1(%arg0: i32) -> (i32, i32) {
    %c0_i32 = arith.constant 0 : i32
    %c0_i32_0 = arith.constant 0 : i32
    return %arg0, %c0_i32 : i32, i32
  }
  func.func @transform_2(%arg0: i32) -> (i32, i32) {
    %c0_i32 = arith.constant 0 : i32
    %c0_i32_0 = arith.constant 0 : i32
    %c0_i32_1 = arith.constant 0 : i32
    return %c0_i32, %c0_i32_0 : i32, i32
  }
  func.func @transform_3(%arg0: i32) -> (i32, i32) {
    %c0_i32 = arith.constant 0 : i32
    %c0_i32_0 = arith.constant 0 : i32
    return %arg0, %c0_i32 : i32, i32
  }
  func.func @transform_4(%arg0: i32) -> (i32, i32) {
    %c0_i32 = arith.constant 0 : i32
    %c0_i32_0 = arith.constant 0 : i32
    return %arg0, %c0_i32 : i32, i32
  }
}

</mosaic_0001>

<llo_original>
// kernel: tpu_custom_call.1
$region0: #{tpu_custom_call.1}
  #allocation0 [shape = 'u32[]', space=smem, size = 0x4, offset = 0x4, fixed_abs, tag = 'smem constant byte address 0x4 - core index']
  #allocation1 [shape = 'u32[144,128]{1,0:T(1,128)}', space=vmem, size = 0x12000, scoped, tag = 'internal scratch']
  %s0 = inlined_call_operand.vmem [shape: f32[16,256], index: 0, kind: input, shape index: {}]
  %s1 = inlined_call_operand.vmem [shape: f32[16,256], index: 1, kind: input, shape index: {}]
  %s2 = inlined_call_operand.vmem [shape: f32[256,16], index: 2, kind: input, shape index: {}]
  %s3 = inlined_call_operand.hbm [shape: bf16[16,256], index: 3, kind: output, shape index: {0}]
  %s4 = inlined_call_operand.hbm [shape: f32[16,16], index: 4, kind: output, shape index: {1}]
  %5 = xla_tuple %s3, %s4
  %s6 = sld [smem:[#allocation0]]
  $region30: #{tpu_custom_call.1} parent=0
    _
  %s8 = ssub.s32 1, %s6
  %s9 = scalar_select 0, %s8, %s6
  $region1: #{tpu_custom_call.1} parent=0
    #allocation2 [shape = 'u8[8192]{0}', space=vmem, size = 0x2000, scoped, tag = 'output window, operand 0, single buffered']
    #allocation3 [shape = 's32[1]{0}', space=sflag, size = 0x4, scoped, tag = 'scoped memory for tpu_custom_call.1']
    #allocation4 [shape = 'u8[8192]{0}', space=vmem, size = 0x2000, scoped, tag = 'output window, operand 1, single buffered']
    #allocation5 [shape = 's32[1]{0}', space=sflag, size = 0x4, scoped, tag = 'scoped memory for tpu_custom_call.1']
    %10 = vsyncpa [#allocation3], 0
    %11 = vsyncpa [#allocation5], 0
    // Predicated region
    $region2: #{tpu_custom_call.1} parent=1 // pred_check
      _
    $region3: #{tpu_custom_call.1} parent=1 // pred_check_branch
      %13 = sbr.rel (0) target = $region5
    $region4: #{tpu_custom_call.1} parent=1 // pred_region
      _
    $region5: #{tpu_custom_call.1} parent=1 // pred_fallthru
      _
    // Predicated region
    $region6: #{tpu_custom_call.1} parent=1 // pred_check
      _
    $region7: #{tpu_custom_call.1} parent=1 // pred_check_branch
      %15 = sbr.rel (0) target = $region9
    $region8: #{tpu_custom_call.1} parent=1 // pred_region
      _
    $region9: #{tpu_custom_call.1} parent=1 // pred_fallthru
      _
    // Predicated region
    $region10: #{tpu_custom_call.1} parent=1 // pred_check
      _
    $region11: #{tpu_custom_call.1} parent=1 // pred_check_branch
      %17 = sbr.rel (0) target = $region13
    $region12: #{tpu_custom_call.1} parent=1 // pred_region
      _
    $region13: #{tpu_custom_call.1} parent=1 // pred_fallthru
      _
    %v18 = vld [vmem:[%s0] sm:$0xff]
    %v19 = vld [vmem:[%s0 + $0x8] sm:$0xff]
    %v20 = vld [vmem:[%s0 + $0x10] sm:$0xff]
    %v21 = vld [vmem:[%s0 + $0x18] sm:$0xff]
    %v22 = vld [vmem:[%s1] sm:$0xff]
    %v23 = vld [vmem:[%s1 + $0x8] sm:$0xff]
    %v24 = vld [vmem:[%s1 + $0x10] sm:$0xff]
    %v25 = vld [vmem:[%s1 + $0x18] sm:$0xff]
    %v26 = vand.u32 2147483647, %v18
    %v27 = vand.u32 2147483647, %v19
    %v28 = vand.u32 2147483647, %v20
    %v29 = vand.u32 2147483647, %v21
    %v30 = vsub.f32 0.0, %v26
    %v31 = vsub.f32 0.0, %v27
    %v32 = vsub.f32 0.0, %v28
    %v33 = vsub.f32 0.0, %v29
    %v34 = vmul.f32 %v30, 1.442695
    %v35 = vpow.pop %v34
    %v36 = vmul.f32 %v31, 1.442695
    %v37 = vpow.pop %v36
    %v38 = vmul.f32 %v32, 1.442695
    %v39 = vpow.pop %v38
    %v40 = vmul.f32 %v33, 1.442695
    %v41 = vpow.pop %v40
    %v42 = vadd.f32 %v35, 1.0
    %v43 = vadd.f32 %v37, 1.0
    %v44 = vadd.f32 %v39, 1.0
    %v45 = vadd.f32 %v41, 1.0
    %v46 = vmul.f32 %v22, %v42
    %v47 = vmul.f32 %v23, %v43
    %v48 = vmul.f32 %v24, %v44
    %v49 = vmul.f32 %v25, %v45
    %vm50 = vcmp.ge.f32.partialorder %v18, 0.0
    %vm51 = vcmp.ge.f32.partialorder %v19, 0.0
    %vm52 = vcmp.ge.f32.partialorder %v20, 0.0
    %vm53 = vcmp.ge.f32.partialorder %v21, 0.0
    %v54 = vsel %vm50, 1.0, %v35
    %v55 = vsel %vm51, 1.0, %v37
    %v56 = vsel %vm52, 1.0, %v39
    %v57 = vsel %vm53, 1.0, %v41
    %vm58 = vcmp.lt.f32.partialorder %v46, %v54
    %vm59 = vcmp.lt.f32.partialorder %v47, %v55
    %vm60 = vcmp.lt.f32.partialorder %v48, %v56
    %vm61 = vcmp.lt.f32.partialorder %v49, %v57
    %v62 = vsel %vm58, 1, 0
    %v63 = vsel %vm59, 1, 0
    %v64 = vsel %vm60, 1, 0
    %v65 = vsel %vm61, 1, 0
    %v66 = vcvt.s32.f32 %v62
    %v67 = vcvt.s32.f32 %v63
    %v68 = vcvt.s32.f32 %v64
    %v69 = vcvt.s32.f32 %v65
    %v70 = vpack.c.bf16 %v68, %v66
    %v71 = vpack.c.bf16 %v69, %v67
    %v74 = vunpack.c.l.b16 %v70
    %v75 = vunpack.c.l.b16 %v71
    %v76 = vunpack.c.h.b16 %v70
    %v77 = vunpack.c.h.b16 %v71
    %v78 = vpack.c.b16 %v75, %v74
    %v79 = vpack.c.b16 %v77, %v76
    %82 = vst [vmem:[#allocation2] sm:$0xff] %v78
    %83 = vst [vmem:[#allocation2 + $0x8] sm:$0xff] %v79
    %v84 = vmax.f32 %v18, 0.0
    %v85 = vmax.f32 %v19, 0.0
    %v86 = vmax.f32 %v20, 0.0
    %v87 = vmax.f32 %v21, 0.0
    %v88 = vadd.f32 %v35, 1.0
    %v89 = vlog2.pop %v88
    %v90 = vmul.f32 %v89, 0.6931472
    %v91 = vmul.f32 -0.5, %v35
    %v92 = vadd.f32 %v91, 1.0
    %v93 = vmul.f32 %v92, %v35
    %v94 = vand.u32 2147483647, %v35
    %vm95 = vcmp.lt.f32.partialorder %v94, 0.0004427343
    %v96 = vsel %vm95, %v93, %v90
    %v97 = vadd.f32 %v37, 1.0
    %v98 = vlog2.pop %v97
    %v99 = vmul.f32 %v98, 0.6931472
    %v100 = vmul.f32 -0.5, %v37
    %v101 = vadd.f32 %v100, 1.0
    %v102 = vmul.f32 %v101, %v37
    %v103 = vand.u32 2147483647, %v37
    %vm104 = vcmp.lt.f32.partialorder %v103, 0.0004427343
    %v105 = vsel %vm104, %v102, %v99
    %v106 = vadd.f32 %v39, 1.0
    %v107 = vlog2.pop %v106
    %v108 = vmul.f32 %v107, 0.6931472
    %v109 = vmul.f32 -0.5, %v39
    %v110 = vadd.f32 %v109, 1.0
    %v111 = vmul.f32 %v110, %v39
    %v112 = vand.u32 2147483647, %v39
    %vm113 = vcmp.lt.f32.partialorder %v112, 0.0004427343
    %v114 = vsel %vm113, %v111, %v108
    %v115 = vadd.f32 %v41, 1.0
    %v116 = vlog2.pop %v115
    %v117 = vmul.f32 %v116, 0.6931472
    %v118 = vmul.f32 -0.5, %v41
    %v119 = vadd.f32 %v118, 1.0
    %v120 = vmul.f32 %v119, %v41
    %v121 = vand.u32 2147483647, %v41
    %vm122 = vcmp.lt.f32.partialorder %v121, 0.0004427343
    %v123 = vsel %vm122, %v120, %v117
    %v124 = vadd.f32 %v84, %v96
    %v125 = vadd.f32 %v85, %v105
    %v126 = vadd.f32 %v86, %v114
    %v127 = vadd.f32 %v87, %v123
    %v128 = vmul.f32 %v66, %v18
    %v129 = vmul.f32 %v67, %v19
    %v130 = vmul.f32 %v68, %v20
    %v131 = vmul.f32 %v69, %v21
    %v132 = vsub.f32 %v128, %v124
    %v133 = vsub.f32 %v129, %v125
    %v134 = vsub.f32 %v130, %v126
    %v135 = vsub.f32 %v131, %v127
    %v136 = vld [vmem:[%s2] sm:$0xff]
    %v137 = vld [vmem:[%s2 + $0x8] sm:$0xff]
    %v138 = vld [vmem:[%s2 + $0x10] sm:$0xff]
    %v139 = vld [vmem:[%s2 + $0x18] sm:$0xff]
    %v140 = vld [vmem:[%s2 + $0x20] sm:$0xff]
    %v141 = vld [vmem:[%s2 + $0x28] sm:$0xff]
    %v142 = vld [vmem:[%s2 + $0x30] sm:$0xff]
    %v143 = vld [vmem:[%s2 + $0x38] sm:$0xff]
    %v144 = vld [vmem:[%s2 + $0x40] sm:$0xff]
    %v145 = vld [vmem:[%s2 + $0x48] sm:$0xff]
    %v146 = vld [vmem:[%s2 + $0x50] sm:$0xff]
    %v147 = vld [vmem:[%s2 + $0x58] sm:$0xff]
    %v148 = vld [vmem:[%s2 + $0x60] sm:$0xff]
    %v149 = vld [vmem:[%s2 + $0x68] sm:$0xff]
    %v150 = vld [vmem:[%s2 + $0x70] sm:$0xff]
    %v151 = vld [vmem:[%s2 + $0x78] sm:$0xff]
    %v152 = vld [vmem:[%s2 + $0x80] sm:$0xff]
    %v153 = vld [vmem:[%s2 + $0x88] sm:$0xff]
    %v154 = vld [vmem:[%s2 + $0x90] sm:$0xff]
    %v155 = vld [vmem:[%s2 + $0x98] sm:$0xff]
    %v156 = vld [vmem:[%s2 + $0xa0] sm:$0xff]
    %v157 = vld [vmem:[%s2 + $0xa8] sm:$0xff]
    %v158 = vld [vmem:[%s2 + $0xb0] sm:$0xff]
    %v159 = vld [vmem:[%s2 + $0xb8] sm:$0xff]
    %v160 = vld [vmem:[%s2 + $0xc0] sm:$0xff]
    %v161 = vld [vmem:[%s2 + $0xc8] sm:$0xff]
    %v162 = vld [vmem:[%s2 + $0xd0] sm:$0xff]
    %v163 = vld [vmem:[%s2 + $0xd8] sm:$0xff]
    %v164 = vld [vmem:[%s2 + $0xe0] sm:$0xff]
    %v165 = vld [vmem:[%s2 + $0xe8] sm:$0xff]
    %v166 = vld [vmem:[%s2 + $0xf0] sm:$0xff]
    %v167 = vld [vmem:[%s2 + $0xf8] sm:$0xff]
    %168 = vmatprep.subr.mxu0 0.0
    %169 = vmatpush1.msra.mxu0 %v136
    %170 = vmatprep.subr.mxu0 0.0
    %171 = vmatpush1.msra.mxu0 %v137
    %172 = vmatprep.subr.mxu0 0.0
    %173 = vmatpush1.msra.mxu0 %v138
    %174 = vmatprep.subr.mxu0 0.0
    %175 = vmatpush1.msra.mxu0 %v139
    %176 = vmatprep.subr.mxu0 0.0
    %177 = vmatpush1.msra.mxu0 %v140
    %178 = vmatprep.subr.mxu0 0.0
    %179 = vmatpush1.msra.mxu0 %v141
    %180 = vmatprep.subr.mxu0 0.0
    %181 = vmatpush1.msra.mxu0 %v142
    %182 = vmatprep.subr.mxu0 0.0
    %183 = vmatpush1.msra.mxu0 %v143
    %184 = vmatprep.subr.mxu0 0.0
    %185 = vmatpush1.msra.mxu0 %v144
    %186 = vmatprep.subr.mxu0 0.0
    %187 = vmatpush1.msra.mxu0 %v145
    %188 = vmatprep.subr.mxu0 0.0
    %189 = vmatpush1.msra.mxu0 %v146
    %190 = vmatprep.subr.mxu0 0.0
    %191 = vmatpush1.msra.mxu0 %v147
    %192 = vmatprep.subr.mxu0 0.0
    %193 = vmatpush1.msra.mxu0 %v148
    %194 = vmatprep.subr.mxu0 0.0
    %195 = vmatpush1.msra.mxu0 %v149
    %196 = vmatprep.subr.mxu0 0.0
    %197 = vmatpush1.msra.mxu0 %v150
    %198 = vmatprep.subr.mxu0 0.0
    %199 = vmatpush1.msra.mxu0 %v151
    %200 = vmatprep.subr.mxu0 0.0
    %201 = vmatpush1.msra.mxu0 %v152
    %202 = vmatprep.subr.mxu0 0.0
    %203 = vmatpush1.msra.mxu0 %v153
    %204 = vmatprep.subr.mxu0 0.0
    %205 = vmatpush1.msra.mxu0 %v154
    %206 = vmatprep.subr.mxu0 0.0
    %207 = vmatpush1.msra.mxu0 %v155
    %208 = vmatprep.subr.mxu0 0.0
    %209 = vmatpush1.msra.mxu0 %v156
    %210 = vmatprep.subr.mxu0 0.0
    %211 = vmatpush1.msra.mxu0 %v157
    %212 = vmatprep.subr.mxu0 0.0
    %213 = vmatpush1.msra.mxu0 %v158
    %214 = vmatprep.subr.mxu0 0.0
    %215 = vmatpush1.msra.mxu0 %v159
    %216 = vmatprep.subr.mxu0 0.0
    %217 = vmatpush1.msra.mxu0 %v160
    %218 = vmatprep.subr.mxu0 0.0
    %219 = vmatpush1.msra.mxu0 %v161
    %220 = vmatprep.subr.mxu0 0.0
    %221 = vmatpush1.msra.mxu0 %v162
    %222 = vmatprep.subr.mxu0 0.0
    %223 = vmatpush1.msra.mxu0 %v163
    %224 = vmatprep.subr.mxu0 0.0
    %225 = vmatpush1.msra.mxu0 %v164
    %226 = vmatprep.subr.mxu0 0.0
    %227 = vmatpush1.msra.mxu0 %v165
    %228 = vmatprep.subr.mxu0 0.0
    %229 = vmatpush1.msra.mxu0 %v166
    %230 = vmatprep.subr.mxu0 0.0
    %231 = vmatpush1.msra.mxu0 %v167
    %232 = vmatprep.mubr.f32.mxu0 %v133
    %233 = vmatmul.mubr.f32.gmra.mrb[0].mxu0 %v132
    %v234 = vpop.f32.mrb[0].mxu0
    %v235 = vadd.f32 0.0, %v234
    %v236 = vpop.f32.mrb[0].mxu0
    %237 = vmatprep.mubr.f32.mxu0 %v135
    %238 = vmatmul.mubr.f32.gmra.mrb[0].mxu0 %v134
    %v239 = vpop.f32.mrb[0].mxu0
    %v240 = vadd.f32 0.0, %v239
    %v241 = vpop.f32.mrb[0].mxu0
    %242 = vdwg.mxu0
    %vm243 = vcmask 130048
    %244 = vst.msk [vmem:[#allocation4] sm:$0xff] %vm243, %v235
    %245 = vst.msk [vmem:[#allocation4 + $0x8] sm:$0xff] %vm243, %v240
    // Predicated region
    $region14: #{tpu_custom_call.1} parent=1 // pred_check
      _
    $region15: #{tpu_custom_call.1} parent=1 // pred_check_branch
      %247 = sbr.rel (0) target = $region17
    $region16: #{tpu_custom_call.1} parent=1 // pred_region
      %s249 = ssub.s32 256, 256
      %250 = vsyncadd [#allocation3], %s249
      %s251 = sshll.u32 [#allocation2], 4
      %s252 = int_to_ptr.vmem [resolvable:$true] %s251
      %257 = dma.vmem_to_hbm [thread:$0]  %s252, 256, %s3, [#allocation3], 128, 128, 8
    $region17: #{tpu_custom_call.1} parent=1 // pred_fallthru
      _
    // Predicated region
    $region18: #{tpu_custom_call.1} parent=1 // pred_check
      _
    $region19: #{tpu_custom_call.1} parent=1 // pred_check_branch
      %259 = sbr.rel (0) target = $region21
    $region20: #{tpu_custom_call.1} parent=1 // pred_region
      %s261 = ssub.s32 256, 256
      %262 = vsyncadd [#allocation5], %s261
      %s263 = sshll.u32 [#allocation4], 4
      %s264 = int_to_ptr.vmem [resolvable:$true] %s263
      %269 = dma.vmem_to_hbm [thread:$0]  %s264, 256, %s4, [#allocation5], 128, 128, 8
    $region21: #{tpu_custom_call.1} parent=1 // pred_fallthru
      _
    // Predicated region
    $region22: #{tpu_custom_call.1} parent=1 // pred_check
      _
    $region23: #{tpu_custom_call.1} parent=1 // pred_check_branch
      %271 = sbr.rel (0) target = $region25
    $region24: #{tpu_custom_call.1} parent=1 // pred_region
      %272 = dma.done [#allocation3], 256
    $region25: #{tpu_custom_call.1} parent=1 // pred_fallthru
      _
    // Predicated region
    $region26: #{tpu_custom_call.1} parent=1 // pred_check
      _
    $region27: #{tpu_custom_call.1} parent=1 // pred_check_branch
      %274 = sbr.rel (0) target = $region29
    $region28: #{tpu_custom_call.1} parent=1 // pred_region
      %275 = dma.done [#allocation5], 256
    $region29: #{tpu_custom_call.1} parent=1 // pred_fallthru
      _
    %276 = vsyncpa [#allocation3], 1
    %277 = vsyncpa [#allocation5], 1

</llo_original>
